<compile_context>
chip_gen: v6e
topology: v6e:2x2x1
jax: 0.10.0
libtpu: 0.0.40
codegen_flags: <defaults>
</compile_context>

<pallas_src>
import math
from functools import partial

import jax
import jax.numpy as jnp
from jax import lax
from jax.experimental import pallas as pl
from jax.experimental.pallas import tpu as pltpu


# ----------------------------------------------------------------------------- helpers

def _round_up(x, m):
    return ((x + m - 1) // m) * m


def _pad2(x, rows, cols):
    return jnp.pad(x, ((0, rows - x.shape[0]), (0, cols - x.shape[1])))


def _bytes(shape, dtype):
    return math.prod(shape) * jnp.dtype(dtype).itemsize


# Cap scoped VMEM at 48 MiB: leaves headroom on v7x (64 MiB physical per TC),
# comfortably legal on v5e/v6e (128 MiB physical).
_VMEM_CAP = 48 * 1024 * 1024


def _vmem_limit(tiles):
    """tiles: (shape, dtype) live per grid step; assume double buffering + slack."""
    total = sum(2 * _bytes(s, d) for s, d in tiles)
    return int(min(max(2 * total, 16 * 1024 * 1024), _VMEM_CAP))


def _pick_tile(dim, max_tile, granule):
    """Largest tile <= max_tile (multiple of granule) without gross padding waste."""
    t = min(max_tile, _round_up(dim, granule))
    while t > granule:
        pad = _round_up(dim, t) - dim
        if pad > t // 2 and pad > dim // 8:
            t = _round_up(max(t // 2, granule), granule)
        else:
            break
    return t


# ----------------------------------------------------------------------------- kernels

def _make_resident_kernel(layer_num):
    """Small-problem fast path: whole forward fully VMEM-resident, f32, no grid."""

    def kernel(adj_ref, xu_ref, xv_ref, wu_ref, wv_ref, bu_ref, bv_ref,
               wfa_ref, wfx_ref, bfc_ref, out_ref):
        adj = adj_ref[...]
        x_u = xu_ref[...]
        x_v = xv_ref[...]
        for layer in range(layer_num):
            h_v = jnp.dot(x_v, wv_ref[...], preferred_element_type=jnp.float32)
            x_u_new = jnp.maximum(
                jnp.dot(adj, h_v, preferred_element_type=jnp.float32) + bu_ref[...],
                0.0)
            if layer + 1 < layer_num:        # last x_v is dead in the module
                h_u = jnp.dot(x_u, wu_ref[...], preferred_element_type=jnp.float32)
                msg_v = lax.dot_general(adj, h_u, (((0,), (0,)), ((), ())),
                                        preferred_element_type=jnp.float32)
                x_v = jnp.maximum(msg_v + bv_ref[...], 0.0)
            x_u = x_u_new
        logits = (jnp.dot(adj, wfa_ref[...], preferred_element_type=jnp.float32)
                  + jnp.dot(x_u, wfx_ref[...], preferred_element_type=jnp.float32)
                  + bfc_ref[...])
        out_ref[...] = jax.nn.sigmoid(logits)

    return kernel


def _project_kernel(x_ref, w_ref, out_ref):
    """h = x @ W, computed once per layer (hoisted out of the adj reduction loop)."""
    out_ref[...] = jnp.dot(x_ref[...], w_ref[...],
                           preferred_element_type=jnp.float32).astype(out_ref.dtype)


def _agg_user_kernel(adj_ref, hv_ref, bu_ref, out_ref, acc_ref):
    """x_u[i] = relu( sum_k adj[i,k] @ h_v[k] + b_u )   (item -> user)."""
    k = pl.program_id(1)

    @pl.when(k == 0)
    def _():
        acc_ref[...] = jnp.zeros_like(acc_ref)

    acc_ref[...] += jnp.dot(adj_ref[...], hv_ref[...],
                            preferred_element_type=jnp.float32)

    @pl.when(k == pl.num_programs(1) - 1)
    def _():
        out_ref[...] = jnp.maximum(acc_ref[...] + bu_ref[...], 0.0).astype(out_ref.dtype)


def _agg_item_kernel(adj_ref, hu_ref, bv_ref, out_ref, acc_ref):
    """x_v[j] = relu( sum_k adj[k,j]^T @ h_u[k] + b_v )  (user -> item).

    The transpose is folded into the contraction dims so the same adj tile the
    user pass uses is consumed directly (no transposed VMEM copy).
    """
    k = pl.program_id(1)

    @pl.when(k == 0)
    def _():
        acc_ref[...] = jnp.zeros_like(acc_ref)

    acc_ref[...] += lax.dot_general(adj_ref[...], hu_ref[...],
                                    (((0,), (0,)), ((), ())),
                                    preferred_element_type=jnp.float32)

    @pl.when(k == pl.num_programs(1) - 1)
    def _():
        out_ref[...] = jnp.maximum(acc_ref[...] + bv_ref[...], 0.0).astype(out_ref.dtype)


def _final_fused_kernel(adj_ref, hv_ref, wfa_ref, bu_ref, wfx_ref, bfc_ref,
                        out_ref, acc_x_ref, acc_fc_ref):
    """Last user-update fused with fc + sigmoid.

    One pass over adj accumulates both adj @ h_v (-> x_u) and adj @ W_fc_adj
    (-> fc logits' adj half); the epilogue applies relu, the x_u half of the fc
    and the sigmoid.
    """
    k = pl.program_id(1)

    @pl.when(k == 0)
    def _():
        acc_x_ref[...] = jnp.zeros_like(acc_x_ref)
        acc_fc_ref[...] = jnp.zeros_like(acc_fc_ref)

    adj = adj_ref[...]
    acc_x_ref[...] += jnp.dot(adj, hv_ref[...], preferred_element_type=jnp.float32)
    acc_fc_ref[...] += jnp.dot(adj, wfa_ref[...], preferred_element_type=jnp.float32)

    @pl.when(k == pl.num_programs(1) - 1)
    def _():
        x_u = jnp.maximum(acc_x_ref[...] + bu_ref[...], 0.0)
        logits = (acc_fc_ref[...]
                  + jnp.dot(x_u.astype(jnp.bfloat16), wfx_ref[...],
                            preferred_element_type=jnp.float32)
                  + bfc_ref[...])
        out_ref[...] = jax.nn.sigmoid(logits)


# ----------------------------------------------------------------------------- builders

def _build_project(R_p, Fin_p, Fout_p, TR):
    bf = jnp.bfloat16
    n_r = R_p // TR
    tiles = [((TR, Fin_p), bf), ((Fin_p, Fout_p), bf), ((TR, Fout_p), bf)]
    return pl.pallas_call(
        _project_kernel,
        out_shape=jax.ShapeDtypeStruct((R_p, Fout_p), bf),
        grid_spec=pltpu.PrefetchScalarGridSpec(
            num_scalar_prefetch=0,
            grid=(n_r,),
            in_specs=[
                pl.BlockSpec((TR, Fin_p), lambda r: (r, 0)),
                pl.BlockSpec((Fin_p, Fout_p), lambda r: (0, 0)),
            ],
            out_specs=pl.BlockSpec((TR, Fout_p), lambda r: (r, 0)),
        ),
        compiler_params=pltpu.CompilerParams(
            dimension_semantics=("parallel",),
            vmem_limit_bytes=_vmem_limit(tiles)),
        cost_estimate=pl.CostEstimate(
            flops=int(2 * R_p * Fin_p * Fout_p), transcendentals=0,
            bytes_accessed=int(_bytes((R_p, Fin_p), bf)
                               + _bytes((Fin_p, Fout_p), bf)
                               + _bytes((R_p, Fout_p), bf))),
    )


def _build_agg_user(U_p, I_p, Fu_p, TU, TI):
    bf, f32 = jnp.bfloat16, jnp.float32
    n_u, n_i = U_p // TU, I_p // TI
    tiles = [((TU, TI), bf), ((TI, Fu_p), bf), ((1, Fu_p), f32),
             ((TU, Fu_p), bf), ((TU, Fu_p), f32)]
    flops = 2 * U_p * I_p * Fu_p
    bytes_accessed = (_bytes((U_p, I_p), bf) + n_u * _bytes((I_p, Fu_p), bf)
                      + _bytes((U_p, Fu_p), bf))
    return pl.pallas_call(
        _agg_user_kernel,
        out_shape=jax.ShapeDtypeStruct((U_p, Fu_p), bf),
        grid_spec=pltpu.PrefetchScalarGridSpec(
            num_scalar_prefetch=0,
            grid=(n_u, n_i),
            in_specs=[
                pl.BlockSpec((TU, TI), lambda i, k: (i, k)),
                pl.BlockSpec((TI, Fu_p), lambda i, k: (k, 0)),
                pl.BlockSpec((1, Fu_p), lambda i, k: (0, 0)),
            ],
            out_specs=pl.BlockSpec((TU, Fu_p), lambda i, k: (i, 0)),
            scratch_shapes=[pltpu.VMEM((TU, Fu_p), jnp.float32)],
        ),
        compiler_params=pltpu.CompilerParams(
            dimension_semantics=("parallel", "arbitrary"),
            vmem_limit_bytes=_vmem_limit(tiles)),
        cost_estimate=pl.CostEstimate(flops=int(flops), transcendentals=0,
                                      bytes_accessed=int(bytes_accessed)),
    )


def _build_agg_item(U_p, I_p, Fv_p, TU, TI):
    bf, f32 = jnp.bfloat16, jnp.float32
    n_u, n_i = U_p // TU, I_p // TI
    tiles = [((TU, TI), bf), ((TU, Fv_p), bf), ((1, Fv_p), f32),
             ((TI, Fv_p), bf), ((TI, Fv_p), f32)]
    flops = 2 * U_p * I_p * Fv_p
    bytes_accessed = (_bytes((U_p, I_p), bf) + n_i * _bytes((U_p, Fv_p), bf)
                      + _bytes((I_p, Fv_p), bf))
    return pl.pallas_call(
        _agg_item_kernel,
        out_shape=jax.ShapeDtypeStruct((I_p, Fv_p), bf),
        grid_spec=pltpu.PrefetchScalarGridSpec(
            num_scalar_prefetch=0,
            grid=(n_i, n_u),
            in_specs=[
                pl.BlockSpec((TU, TI), lambda j, k: (k, j)),
                pl.BlockSpec((TU, Fv_p), lambda j, k: (k, 0)),
                pl.BlockSpec((1, Fv_p), lambda j, k: (0, 0)),
            ],
            out_specs=pl.BlockSpec((TI, Fv_p), lambda j, k: (j, 0)),
            scratch_shapes=[pltpu.VMEM((TI, Fv_p), jnp.float32)],
        ),
        compiler_params=pltpu.CompilerParams(
            dimension_semantics=("parallel", "arbitrary"),
            vmem_limit_bytes=_vmem_limit(tiles)),
        cost_estimate=pl.CostEstimate(flops=int(flops), transcendentals=0,
                                      bytes_accessed=int(bytes_accessed)),
    )


def _build_final_fused(U_p, I_p, Fu_p, O_p, TU, TI):
    bf, f32 = jnp.bfloat16, jnp.float32
    n_u, n_i = U_p // TU, I_p // TI
    tiles = [((TU, TI), bf), ((TI, Fu_p), bf), ((TI, O_p), bf), ((1, Fu_p), f32),
             ((Fu_p, O_p), bf), ((1, O_p), f32), ((TU, O_p), f32),
             ((TU, Fu_p), f32), ((TU, O_p), f32)]
    flops = 2 * U_p * I_p * (Fu_p + O_p) + 2 * U_p * Fu_p * O_p
    bytes_accessed = (_bytes((U_p, I_p), bf)
                      + n_u * (_bytes((I_p, Fu_p), bf) + _bytes((I_p, O_p), bf))
                      + _bytes((Fu_p, O_p), bf) + _bytes((U_p, O_p), f32))
    return pl.pallas_call(
        _final_fused_kernel,
        out_shape=jax.ShapeDtypeStruct((U_p, O_p), f32),
        grid_spec=pltpu.PrefetchScalarGridSpec(
            num_scalar_prefetch=0,
            grid=(n_u, n_i),
            in_specs=[
                pl.BlockSpec((TU, TI), lambda i, k: (i, k)),
                pl.BlockSpec((TI, Fu_p), lambda i, k: (k, 0)),
                pl.BlockSpec((TI, O_p), lambda i, k: (k, 0)),
                pl.BlockSpec((1, Fu_p), lambda i, k: (0, 0)),
                pl.BlockSpec((Fu_p, O_p), lambda i, k: (0, 0)),
                pl.BlockSpec((1, O_p), lambda i, k: (0, 0)),
            ],
            out_specs=pl.BlockSpec((TU, O_p), lambda i, k: (i, 0)),
            scratch_shapes=[pltpu.VMEM((TU, Fu_p), jnp.float32),
                            pltpu.VMEM((TU, O_p), jnp.float32)],
        ),
        compiler_params=pltpu.CompilerParams(
            dimension_semantics=("parallel", "arbitrary"),
            vmem_limit_bytes=_vmem_limit(tiles)),
        cost_estimate=pl.CostEstimate(flops=int(flops), transcendentals=int(U_p * O_p),
                                      bytes_accessed=int(bytes_accessed)),
    )


# ----------------------------------------------------------------------------- forward

@partial(jax.jit, static_argnames=("layer_num", "tile_u", "tile_i",
                                   "small_path_max_bytes"))
def discriminator_forward(adj, u_feature, v_feature, params, *, layer_num,
                          tile_u=1024, tile_i=2048,
                          small_path_max_bytes=4 * 1024 * 1024):
    """discriminator forward: layer_num bipartite graph convs + fc + sigmoid."""
    assert layer_num >= 1
    f32, bf = jnp.float32, jnp.bfloat16
    U, I = adj.shape
    Fu = u_feature.shape[1]
    Fv = v_feature.shape[1]
    O = params["w_fc"].shape[1]

    # Lane-dense padding: feature/output dims -> multiples of 128 (kept at 128,
    # not 256: the kernels are HBM-bound, wider N gains nothing).
    Fu_p, Fv_p, O_p = (_round_up(d, 128) for d in (Fu, Fv, O))

    # ---- small-problem fast path: whole forward in one VMEM-resident call ----
    U_s, I_s = _round_up(U, 8), _round_up(I, 128)
    small_bytes = 4 * (U_s * I_s + U_s * Fu_p + I_s * Fv_p + 2 * Fu_p * Fv_p
                       + I_s * O_p + Fu_p * O_p + U_s * O_p + Fu_p + Fv_p + O_p)
    if small_bytes <= small_path_max_bytes:
        args = (
            _pad2(adj, U_s, I_s).astype(f32),
            _pad2(u_feature, U_s, Fu_p).astype(f32),
            _pad2(v_feature, I_s, Fv_p).astype(f32),
            _pad2(params["w_u"], Fu_p, Fv_p).astype(f32),
            _pad2(params["w_v"], Fv_p, Fu_p).astype(f32),
            _pad2(params["b_u"], 1, Fu_p).astype(f32),
            _pad2(params["b_v"], 1, Fv_p).astype(f32),
            _pad2(params["w_fc"][:I], I_s, O_p).astype(f32),
            _pad2(params["w_fc"][I:], Fu_p, O_p).astype(f32),
            _pad2(params["b_fc"], 1, O_p).astype(f32),
        )
        out = pl.pallas_call(
            _make_resident_kernel(layer_num),
            out_shape=jax.ShapeDtypeStruct((U_s, O_p), f32),
        )(*args)
        return out[:U, :O]

    # ---- tiled, pipelined path (large problems) ----
    TU = _pick_tile(U, tile_u, 16)
    # v7x has 2 TensorCores: keep the "parallel" row axis at >= 2 grid steps.
    if U > 512 and _round_up(U, TU) // TU < 2:
        TU = _round_up((TU + 1) // 2, 16)
    TI = _pick_tile(I, tile_i, 128)
    U_p, I_p = _round_up(U, TU), _round_up(I, TI)

    adj_b = _pad2(adj, U_p, I_p).astype(bf)          # bf16 halves adj HBM traffic
    x_u = _pad2(u_feature, U_p, Fu_p).astype(bf)
    x_v = _pad2(v_feature, I_p, Fv_p).astype(bf)
    w_u = _pad2(params["w_u"], Fu_p, Fv_p).astype(bf)
    w_v = _pad2(params["w_v"], Fv_p, Fu_p).astype(bf)
    b_u = _pad2(params["b_u"], 1, Fu_p).astype(f32)
    b_v = _pad2(params["b_v"], 1, Fv_p).astype(f32)
    w_fc_adj = _pad2(params["w_fc"][:I], I_p, O_p).astype(bf)
    w_fc_xu = _pad2(params["w_fc"][I:], Fu_p, O_p).astype(bf)
    b_fc = _pad2(params["b_fc"], 1, O_p).astype(f32)

    proj_v = _build_project(I_p, Fv_p, Fu_p, TI)      # h_v = x_v @ W_v
    final_fused = _build_final_fused(U_p, I_p, Fu_p, O_p, TU, TI)

    if layer_num > 1:
        proj_u = _build_project(U_p, Fu_p, Fv_p, TU)  # h_u = x_u @ W_u
        agg_user = _build_agg_user(U_p, I_p, Fu_p, TU, TI)
        agg_item = _build_agg_item(U_p, I_p, Fv_p, TU, TI)
        for _ in range(layer_num - 1):                # simultaneous update
            h_v = proj_v(x_v, w_v)
            h_u = proj_u(x_u, w_u)
            x_u = agg_user(adj_b, h_v, b_u)
            x_v = agg_item(adj_b, h_u, b_v)

    # Last layer's user update fused with fc + sigmoid; the dead last item
    # update is skipped entirely (adj streamed 2*layer_num-1 times in total).
    h_v = proj_v(x_v, w_v)
    out = final_fused(adj_b, h_v, w_fc_adj, b_u, w_fc_xu, b_fc)
    return out[:U, :O]


# ----------------------------------------------------------------------------- params / reference

def init_params(key, num_item, in_features_u, in_features_v, output_dim):
    """Deterministic synthetic parameter init (stands in for utils.initialize_weights)."""
    k1, k2, k3 = jax.random.split(key, 3)
    scale = 0.1
    return {
        # user -> item message weights: (Fu, Fv)
        "w_u": scale * jax.random.normal(k1, (in_features_u, in_features_v), jnp.float32),
        "b_v": jnp.zeros((1, in_features_v), jnp.float32),
        # item -> user message weights: (Fv, Fu)
        "w_v": scale * jax.random.normal(k2, (in_features_v, in_features_u), jnp.float32),
        "b_u": jnp.zeros((1, in_features_u), jnp.float32),
        # final Linear(num_item + Fu, output_dim); stored pre-transposed (in, out)
        "w_fc": scale * jax.random.normal(k3, (num_item + in_features_u, output_dim),
                                          jnp.float32),
        "b_fc": jnp.zeros((1, output_dim), jnp.float32),
    }


def _reference_f32(adj, u_feature, v_feature, params, layer_num):
    """Pure-JAX f32 reference of the same forward pass (for tolerance checks)."""
    x_u, x_v = u_feature, v_feature
    for _ in range(layer_num):
        msg_u = adj @ (x_v @ params["w_v"]) + params["b_u"]
        msg_v = adj.T @ (x_u @ params["w_u"]) + params["b_v"]
        x_u = jnp.maximum(msg_u, 0.0)
        x_v = jnp.maximum(msg_v, 0.0)
    x = jnp.concatenate([adj, x_u], axis=-1)
    return jax.nn.sigmoid(x @ params["w_fc"] + params["b_fc"])


# ----------------------------------------------------------------------------- main

if __name__ == "__main__":
    num_user = 8
    num_item = 16
    in_features_u = 8
    in_features_v = 16
    rating = 5          # TODO(synk): per-rating weight decomposition not reproducible
    output_dim = 8
    layer_num = 2

    key = jax.random.PRNGKey(0)
    k_adj, k_u, k_v, k_p = jax.random.split(key, 4)

    adj = jax.random.randint(k_adj, (num_user, num_item), 0, rating + 1).astype(jnp.float32)
    u_feature = jax.random.normal(k_u, (num_user, in_features_u), jnp.float32)
    v_feature = jax.random.normal(k_v, (num_item, in_features_v), jnp.float32)
    params = init_params(k_p, num_item, in_features_u, in_features_v, output_dim)

    ref = _reference_f32(adj, u_feature, v_feature, params, layer_num)

    # Default dispatch -> small-problem fast path (single VMEM-resident kernel).
    out = discriminator_forward(adj, u_feature, v_feature, params, layer_num=layer_num)
    out = jax.block_until_ready(out)
    assert out.shape == (num_user, output_dim)
    assert bool(jnp.all(jnp.isfinite(out)))
    assert bool(jnp.all((out >= 0.0) & (out <= 1.0)))               # sigmoid range
    assert bool(jnp.allclose(out, ref, atol=5e-2)), float(jnp.max(jnp.abs(out - ref)))

    # Also exercise the tiled bf16/f32-accumulate path (what large shapes use).
    out_t = discriminator_forward(adj, u_feature, v_feature, params,
                                  layer_num=layer_num, small_path_max_bytes=0)
    out_t = jax.block_until_ready(out_t)
    assert out_t.shape == (num_user, output_dim)
    assert bool(jnp.all(jnp.isfinite(out_t)))
    assert bool(jnp.allclose(out_t, ref, atol=1e-1)), float(jnp.max(jnp.abs(out_t - ref)))

    print("KERNEL_OK")
</pallas_src>

<mosaic_0001>
module attributes {stable_mosaic.version = 11 : i64} {
  func.func @kernel(%arg0: memref<8x128xf32, #tpu.memory_space<vmem>>, %arg1: memref<8x128xf32, #tpu.memory_space<vmem>>, %arg2: memref<128x128xf32, #tpu.memory_space<vmem>>, %arg3: memref<128x128xf32, #tpu.memory_space<vmem>>, %arg4: memref<128x128xf32, #tpu.memory_space<vmem>>, %arg5: memref<1x128xf32, #tpu.memory_space<vmem>>, %arg6: memref<1x128xf32, #tpu.memory_space<vmem>>, %arg7: memref<128x128xf32, #tpu.memory_space<vmem>>, %arg8: memref<128x128xf32, #tpu.memory_space<vmem>>, %arg9: memref<1x128xf32, #tpu.memory_space<vmem>>, %arg10: memref<8x128xf32, #tpu.memory_space<vmem>>) attributes {dimension_semantics = [], scalar_prefetch = 0 : i64, scratch_operands = 0 : i64, tpu.core_type = #tpu.core_type<tc>} {
    %c0 = arith.constant 0 : index
    %c0_0 = arith.constant 0 : index
    %0 = vector.load %arg0[%c0, %c0_0] : memref<8x128xf32, #tpu.memory_space<vmem>>, vector<8x128xf32>
    %c0_1 = arith.constant 0 : index
    %c0_2 = arith.constant 0 : index
    %1 = vector.load %arg1[%c0_1, %c0_2] : memref<8x128xf32, #tpu.memory_space<vmem>>, vector<8x128xf32>
    %c0_3 = arith.constant 0 : index
    %c0_4 = arith.constant 0 : index
    %2 = vector.load %arg3[%c0_3, %c0_4] : memref<128x128xf32, #tpu.memory_space<vmem>>, vector<128x128xf32>
    %cst = arith.constant dense<0.000000e+00> : vector<8x128xf32>
    %3 = tpu.matmul %1, %2, %cst {dimension_numbers = #tpu.dot_dimension_numbers<[1], [0], [0], [1], [0, 0, 1, 1], [], []>} : vector<8x128xf32>, vector<128x128xf32>, vector<8x128xf32> -> vector<8x128xf32>
    %cst_5 = arith.constant dense<0.000000e+00> : vector<128x128xf32>
    %4 = tpu.matmul %0, %3, %cst_5 {dimension_numbers = #tpu.dot_dimension_numbers<[0], [0], [1], [1], [0, 1, 1, 1], [], []>} : vector<8x128xf32>, vector<8x128xf32>, vector<128x128xf32> -> vector<128x128xf32>
    %c0_6 = arith.constant 0 : index
    %c0_7 = arith.constant 0 : index
    %5 = vector.load %arg6[%c0_6, %c0_7] : memref<1x128xf32, #tpu.memory_space<vmem>>, vector<1x128xf32>
    %6 = vector.broadcast %5 : vector<1x128xf32> to vector<128x128xf32>
    %7 = arith.addf %4, %6 : vector<128x128xf32>
    %cst_8 = arith.constant 0.000000e+00 : f32
    %8 = vector.broadcast %cst_8 : f32 to vector<128x128xf32>
    %9 = arith.maximumf %7, %8 : vector<128x128xf32>
    %c0_9 = arith.constant 0 : index
    %c0_10 = arith.constant 0 : index
    %10 = vector.load %arg4[%c0_9, %c0_10] : memref<128x128xf32, #tpu.memory_space<vmem>>, vector<128x128xf32>
    %cst_11 = arith.constant dense<0.000000e+00> : vector<128x128xf32>
    %11 = tpu.matmul %9, %10, %cst_11 {dimension_numbers = #tpu.dot_dimension_numbers<[1], [0], [0], [1], [0, 0, 1, 1], [], []>} : vector<128x128xf32>, vector<128x128xf32>, vector<128x128xf32> -> vector<128x128xf32>
    %cst_12 = arith.constant dense<0.000000e+00> : vector<8x128xf32>
    %12 = tpu.matmul %0, %11, %cst_12 {dimension_numbers = #tpu.dot_dimension_numbers<[1], [0], [0], [1], [0, 0, 1, 1], [], []>} : vector<8x128xf32>, vector<128x128xf32>, vector<8x128xf32> -> vector<8x128xf32>
    %c0_13 = arith.constant 0 : index
    %c0_14 = arith.constant 0 : index
    %13 = vector.load %arg5[%c0_13, %c0_14] : memref<1x128xf32, #tpu.memory_space<vmem>>, vector<1x128xf32>
    %14 = vector.broadcast %13 : vector<1x128xf32> to vector<8x128xf32>
    %15 = arith.addf %12, %14 : vector<8x128xf32>
    %cst_15 = arith.constant 0.000000e+00 : f32
    %16 = vector.broadcast %cst_15 : f32 to vector<8x128xf32>
    %17 = arith.maximumf %15, %16 : vector<8x128xf32>
    %c0_16 = arith.constant 0 : index
    %c0_17 = arith.constant 0 : index
    %18 = vector.load %arg7[%c0_16, %c0_17] : memref<128x128xf32, #tpu.memory_space<vmem>>, vector<128x128xf32>
    %cst_18 = arith.constant dense<0.000000e+00> : vector<8x128xf32>
    %19 = tpu.matmul %0, %18, %cst_18 {dimension_numbers = #tpu.dot_dimension_numbers<[1], [0], [0], [1], [0, 0, 1, 1], [], []>} : vector<8x128xf32>, vector<128x128xf32>, vector<8x128xf32> -> vector<8x128xf32>
    %c0_19 = arith.constant 0 : index
    %c0_20 = arith.constant 0 : index
    %20 = vector.load %arg8[%c0_19, %c0_20] : memref<128x128xf32, #tpu.memory_space<vmem>>, vector<128x128xf32>
    %cst_21 = arith.constant dense<0.000000e+00> : vector<8x128xf32>
    %21 = tpu.matmul %17, %20, %cst_21 {dimension_numbers = #tpu.dot_dimension_numbers<[1], [0], [0], [1], [0, 0, 1, 1], [], []>} : vector<8x128xf32>, vector<128x128xf32>, vector<8x128xf32> -> vector<8x128xf32>
    %22 = arith.addf %19, %21 : vector<8x128xf32>
    %c0_22 = arith.constant 0 : index
    %c0_23 = arith.constant 0 : index
    %23 = vector.load %arg9[%c0_22, %c0_23] : memref<1x128xf32, #tpu.memory_space<vmem>>, vector<1x128xf32>
    %24 = vector.broadcast %23 : vector<1x128xf32> to vector<8x128xf32>
    %25 = arith.addf %22, %24 : vector<8x128xf32>
    %26 = arith.negf %25 : vector<8x128xf32>
    %27 = math.exp %26 : vector<8x128xf32>
    %cst_24 = arith.constant 1.000000e+00 : f32
    %28 = vector.broadcast %cst_24 : f32 to vector<8x128xf32>
    %29 = arith.addf %28, %27 : vector<8x128xf32>
    %30 = arith.divf %28, %29 : vector<8x128xf32>
    %c0_25 = arith.constant 0 : index
    %c0_26 = arith.constant 0 : index
    %31 = vector.load %arg10[%c0_25, %c0_26] : memref<8x128xf32, #tpu.memory_space<vmem>>, vector<8x128xf32>
    tpu.vector_store %arg10[%c0_25, %c0_26], %30 {strides = array<i32>} : memref<8x128xf32, #tpu.memory_space<vmem>>, vector<8x128xf32>,
    return
  }
}

</mosaic_0001>

<llo_original>
// kernel: discriminator_forward.1
$region0: #{discriminator_forward.1}
  #allocation0 [shape = 'u32[]', space=smem, size = 0x4, offset = 0x4, fixed_abs, tag = 'smem constant byte address 0x4 - core index']
  #allocation1 [shape = 'u32[144,128]{1,0:T(1,128)}', space=vmem, size = 0x12000, scoped, tag = 'internal scratch']
  %s0 = inlined_call_operand.vmem [shape: f32[8,128], index: 0, kind: input, shape index: {}]
  %s1 = inlined_call_operand.vmem [shape: f32[8,128], index: 1, kind: input, shape index: {}]
  %s2 = inlined_call_operand.vmem [shape: f32[128,128], index: 2, kind: input, shape index: {}]
  %s3 = inlined_call_operand.vmem [shape: f32[128,128], index: 3, kind: input, shape index: {}]
  %s4 = inlined_call_operand.vmem [shape: f32[128,128], index: 4, kind: input, shape index: {}]
  %s5 = inlined_call_operand.vmem [shape: f32[1,128], index: 5, kind: input, shape index: {}]
  %s6 = inlined_call_operand.vmem [shape: f32[1,128], index: 6, kind: input, shape index: {}]
  %s7 = inlined_call_operand.vmem [shape: f32[128,128], index: 7, kind: input, shape index: {}]
  %s8 = inlined_call_operand.vmem [shape: f32[128,128], index: 8, kind: input, shape index: {}]
  %s9 = inlined_call_operand.vmem [shape: f32[1,128], index: 9, kind: input, shape index: {}]
  %s10 = inlined_call_operand.hbm [shape: f32[8,128], index: 10, kind: output, shape index: {}]
  %s11 = sld [smem:[#allocation0]]
  $region50: #{discriminator_forward.1} parent=0
    _
  %s13 = ssub.s32 1, %s11
  %s14 = scalar_select 0, %s13, %s11
  $region1: #{discriminator_forward.1} parent=0
    #allocation2 [shape = 'u8[4096]{0}', space=vmem, size = 0x1000, scoped, tag = 'output window, operand 0, single buffered']
    #allocation3 [shape = 's32[1]{0}', space=sflag, size = 0x4, scoped, tag = 'scoped memory for discriminator_forward.1']
    %15 = vsyncpa [#allocation3], 0
    // Predicated region
    $region2: #{discriminator_forward.1} parent=1 // pred_check
      _
    $region3: #{discriminator_forward.1} parent=1 // pred_check_branch
      %17 = sbr.rel (0) target = $region5
    $region4: #{discriminator_forward.1} parent=1 // pred_region
      _
    $region5: #{discriminator_forward.1} parent=1 // pred_fallthru
      _
    // Predicated region
    $region6: #{discriminator_forward.1} parent=1 // pred_check
      _
    $region7: #{discriminator_forward.1} parent=1 // pred_check_branch
      %19 = sbr.rel (0) target = $region9
    $region8: #{discriminator_forward.1} parent=1 // pred_region
      _
    $region9: #{discriminator_forward.1} parent=1 // pred_fallthru
      _
    // Predicated region
    $region10: #{discriminator_forward.1} parent=1 // pred_check
      _
    $region11: #{discriminator_forward.1} parent=1 // pred_check_branch
      %21 = sbr.rel (0) target = $region13
    $region12: #{discriminator_forward.1} parent=1 // pred_region
      _
    $region13: #{discriminator_forward.1} parent=1 // pred_fallthru
      _
    // Predicated region
    $region14: #{discriminator_forward.1} parent=1 // pred_check
      _
    $region15: #{discriminator_forward.1} parent=1 // pred_check_branch
      %23 = sbr.rel (0) target = $region17
    $region16: #{discriminator_forward.1} parent=1 // pred_region
      _
    $region17: #{discriminator_forward.1} parent=1 // pred_fallthru
      _
    // Predicated region
    $region18: #{discriminator_forward.1} parent=1 // pred_check
      _
    $region19: #{discriminator_forward.1} parent=1 // pred_check_branch
      %25 = sbr.rel (0) target = $region21
    $region20: #{discriminator_forward.1} parent=1 // pred_region
      _
    $region21: #{discriminator_forward.1} parent=1 // pred_fallthru
      _
    // Predicated region
    $region22: #{discriminator_forward.1} parent=1 // pred_check
      _
    $region23: #{discriminator_forward.1} parent=1 // pred_check_branch
      %27 = sbr.rel (0) target = $region25
    $region24: #{discriminator_forward.1} parent=1 // pred_region
      _
    $region25: #{discriminator_forward.1} parent=1 // pred_fallthru
      _
    // Predicated region
    $region26: #{discriminator_forward.1} parent=1 // pred_check
      _
    $region27: #{discriminator_forward.1} parent=1 // pred_check_branch
      %29 = sbr.rel (0) target = $region29
    $region28: #{discriminator_forward.1} parent=1 // pred_region
      _
    $region29: #{discriminator_forward.1} parent=1 // pred_fallthru
      _
    // Predicated region
    $region30: #{discriminator_forward.1} parent=1 // pred_check
      _
    $region31: #{discriminator_forward.1} parent=1 // pred_check_branch
      %31 = sbr.rel (0) target = $region33
    $region32: #{discriminator_forward.1} parent=1 // pred_region
      _
    $region33: #{discriminator_forward.1} parent=1 // pred_fallthru
      _
    // Predicated region
    $region34: #{discriminator_forward.1} parent=1 // pred_check
      _
    $region35: #{discriminator_forward.1} parent=1 // pred_check_branch
      %33 = sbr.rel (0) target = $region37
    $region36: #{discriminator_forward.1} parent=1 // pred_region
      _
    $region37: #{discriminator_forward.1} parent=1 // pred_fallthru
      _
    // Predicated region
    $region38: #{discriminator_forward.1} parent=1 // pred_check
      _
    $region39: #{discriminator_forward.1} parent=1 // pred_check_branch
      %35 = sbr.rel (0) target = $region41
    $region40: #{discriminator_forward.1} parent=1 // pred_region
      _
    $region41: #{discriminator_forward.1} parent=1 // pred_fallthru
      _
    %v36 = vld [vmem:[%s0] sm:$0xff]
    %v37 = vld [vmem:[%s1] sm:$0xff]
    %v38 = vld [vmem:[%s3] sm:$0xff]
    %v39 = vld [vmem:[%s3 + $0x8] sm:$0xff]
    %v40 = vld [vmem:[%s3 + $0x10] sm:$0xff]
    %v41 = vld [vmem:[%s3 + $0x18] sm:$0xff]
    %v42 = vld [vmem:[%s3 + $0x20] sm:$0xff]
    %v43 = vld [vmem:[%s3 + $0x28] sm:$0xff]
    %v44 = vld [vmem:[%s3 + $0x30] sm:$0xff]
    %v45 = vld [vmem:[%s3 + $0x38] sm:$0xff]
    %v46 = vld [vmem:[%s3 + $0x40] sm:$0xff]
    %v47 = vld [vmem:[%s3 + $0x48] sm:$0xff]
    %v48 = vld [vmem:[%s3 + $0x50] sm:$0xff]
    %v49 = vld [vmem:[%s3 + $0x58] sm:$0xff]
    %v50 = vld [vmem:[%s3 + $0x60] sm:$0xff]
    %v51 = vld [vmem:[%s3 + $0x68] sm:$0xff]
    %v52 = vld [vmem:[%s3 + $0x70] sm:$0xff]
    %v53 = vld [vmem:[%s3 + $0x78] sm:$0xff]
    %54 = vmatprep.subr.mxu0 0.0
    %55 = vmatpush1.msra.mxu0 %v53
    %56 = vmatprep.subr.mxu0 0.0
    %57 = vmatpush1.msra.mxu0 %v52
    %58 = vmatprep.subr.mxu0 0.0
    %59 = vmatpush1.msra.mxu0 %v51
    %60 = vmatprep.subr.mxu0 0.0
    %61 = vmatpush1.msra.mxu0 %v50
    %62 = vmatprep.subr.mxu0 0.0
    %63 = vmatpush1.msra.mxu0 %v49
    %64 = vmatprep.subr.mxu0 0.0
    %65 = vmatpush1.msra.mxu0 %v48
    %66 = vmatprep.subr.mxu0 0.0
    %67 = vmatpush1.msra.mxu0 %v47
    %68 = vmatprep.subr.mxu0 0.0
    %69 = vmatpush1.msra.mxu0 %v46
    %70 = vmatprep.subr.mxu0 0.0
    %71 = vmatpush1.msra.mxu0 %v45
    %72 = vmatprep.subr.mxu0 0.0
    %73 = vmatpush1.msra.mxu0 %v44
    %74 = vmatprep.subr.mxu0 0.0
    %75 = vmatpush1.msra.mxu0 %v43
    %76 = vmatprep.subr.mxu0 0.0
    %77 = vmatpush1.msra.mxu0 %v42
    %78 = vmatprep.subr.mxu0 0.0
    %79 = vmatpush1.msra.mxu0 %v41
    %80 = vmatprep.subr.mxu0 0.0
    %81 = vmatpush1.msra.mxu0 %v40
    %82 = vmatprep.subr.mxu0 0.0
    %83 = vmatpush1.msra.mxu0 %v39
    %84 = vmatprep.subr.mxu0 0.0
    %85 = vmatpush1.msra.mxu0 %v38
    %86 = vmatprep.subr.mxu0 0.0
    %87 = vmatpush2.msra.mxu0 0.0
    %88 = vmatprep.subr.mxu0 0.0
    %89 = vmatpush2.msra.mxu0 0.0
    %90 = vmatprep.subr.mxu0 0.0
    %91 = vmatpush2.msra.mxu0 0.0
    %92 = vmatprep.subr.mxu0 0.0
    %93 = vmatpush2.msra.mxu0 0.0
    %94 = vmatprep.subr.mxu0 0.0
    %95 = vmatpush2.msra.mxu0 0.0
    %96 = vmatprep.subr.mxu0 0.0
    %97 = vmatpush2.msra.mxu0 0.0
    %98 = vmatprep.subr.mxu0 0.0
    %99 = vmatpush2.msra.mxu0 0.0
    %100 = vmatprep.subr.mxu0 0.0
    %101 = vmatpush2.msra.mxu0 0.0
    %102 = vmatprep.subr.mxu0 0.0
    %103 = vmatpush2.msra.mxu0 0.0
    %104 = vmatprep.subr.mxu0 0.0
    %105 = vmatpush2.msra.mxu0 0.0
    %106 = vmatprep.subr.mxu0 0.0
    %107 = vmatpush2.msra.mxu0 0.0
    %108 = vmatprep.subr.mxu0 0.0
    %109 = vmatpush2.msra.mxu0 0.0
    %110 = vmatprep.subr.mxu0 0.0
    %111 = vmatpush2.msra.mxu0 0.0
    %112 = vmatprep.subr.mxu0 0.0
    %113 = vmatpush2.msra.mxu0 0.0
    %114 = vmatprep.subr.mxu0 0.0
    %115 = vmatpush2.msra.mxu0 0.0
    %116 = vmatprep.subr.mxu0 0.0
    %117 = vmatpush2.msra.mxu0 0.0
    %118 = vmatprep.mubr.f32.mxu0 0.0
    %119 = vmatmul.mubr.f32.gmra.mxu0 %v37
    %v120 = vpop.f32.mrf.mxu0
    %v121 = vadd.f32 0.0, %v120
    %v122 = vpop.f32.mrf.mxu0
    %123 = vdwg.mxu0
    %v124 = vld [vmem:[%s6] sm:$0x1]
    %v126 = vlaneseq
    %v127 = vshrl.u32 %v126, 7
    %v128 = vsub.s32 0, %v127
    %v129 = vrot.slane %v124, %v128
    %131 = vxpose.xlu0.b32.start [1/16] %v36, 128
    %132 = vxpose.xlu0.b32.cont [2/16] 0.0, 128
    %133 = vxpose.xlu0.b32.cont [3/16] 0.0, 128
    %134 = vxpose.xlu0.b32.cont [4/16] 0.0, 128
    %135 = vxpose.xlu0.b32.cont [5/16] 0.0, 128
    %136 = vxpose.xlu0.b32.cont [6/16] 0.0, 128
    %137 = vxpose.xlu0.b32.cont [7/16] 0.0, 128
    %138 = vxpose.xlu0.b32.cont [8/16] 0.0, 128
    %139 = vxpose.xlu0.b32.cont [9/16] 0.0, 128
    %140 = vxpose.xlu0.b32.cont [10/16] 0.0, 128
    %141 = vxpose.xlu0.b32.cont [11/16] 0.0, 128
    %142 = vxpose.xlu0.b32.cont [12/16] 0.0, 128
    %143 = vxpose.xlu0.b32.cont [13/16] 0.0, 128
    %144 = vxpose.xlu0.b32.cont [14/16] 0.0, 128
    %145 = vxpose.xlu0.b32.cont [15/16] 0.0, 128
    %146 = vxpose.xlu0.b32.end [16/16] 0.0, 128
    %v147 = vpop.trf.xlu0
    %v148 = vpop.trf.xlu0
    %v149 = vpop.trf.xlu0
    %v150 = vpop.trf.xlu0
    %v151 = vpop.trf.xlu0
    %v152 = vpop.trf.xlu0
    %v153 = vpop.trf.xlu0
    %v154 = vpop.trf.xlu0
    %v155 = vpop.trf.xlu0
    %v156 = vpop.trf.xlu0
    %v157 = vpop.trf.xlu0
    %v158 = vpop.trf.xlu0
    %v159 = vpop.trf.xlu0
    %v160 = vpop.trf.xlu0
    %v161 = vpop.trf.xlu0
    %v162 = vpop.trf.xlu0
    %vm163 = vcmask 64512
    %v165 = vsel %vm163, %v147, 0
    %v168 = vsel %vm163, %v148, 0
    %v171 = vsel %vm163, %v149, 0
    %v174 = vsel %vm163, %v150, 0
    %v177 = vsel %vm163, %v151, 0
    %v180 = vsel %vm163, %v152, 0
    %v183 = vsel %vm163, %v153, 0
    %v186 = vsel %vm163, %v154, 0
    %v189 = vsel %vm163, %v155, 0
    %v192 = vsel %vm163, %v156, 0
    %v195 = vsel %vm163, %v157, 0
    %v198 = vsel %vm163, %v158, 0
    %v201 = vsel %vm163, %v159, 0
    %v204 = vsel %vm163, %v160, 0
    %v207 = vsel %vm163, %v161, 0
    %v210 = vsel %vm163, %v162, 0
    %212 = vmatprep.subr.mxu0 0.0
    %213 = vmatpush1.msra.mxu0 0.0
    %214 = vmatprep.subr.mxu0 0.0
    %215 = vmatpush1.msra.mxu0 0.0
    %216 = vmatprep.subr.mxu0 0.0
    %217 = vmatpush1.msra.mxu0 0.0
    %218 = vmatprep.subr.mxu0 0.0
    %219 = vmatpush1.msra.mxu0 0.0
    %220 = vmatprep.subr.mxu0 0.0
    %221 = vmatpush1.msra.mxu0 0.0
    %222 = vmatprep.subr.mxu0 0.0
    %223 = vmatpush1.msra.mxu0 0.0
    %224 = vmatprep.subr.mxu0 0.0
    %225 = vmatpush1.msra.mxu0 0.0
    %226 = vmatprep.subr.mxu0 0.0
    %227 = vmatpush1.msra.mxu0 0.0
    %228 = vmatprep.subr.mxu0 0.0
    %229 = vmatpush1.msra.mxu0 0.0
    %230 = vmatprep.subr.mxu0 0.0
    %231 = vmatpush1.msra.mxu0 0.0
    %232 = vmatprep.subr.mxu0 0.0
    %233 = vmatpush1.msra.mxu0 0.0
    %234 = vmatprep.subr.mxu0 0.0
    %235 = vmatpush1.msra.mxu0 0.0
    %236 = vmatprep.subr.mxu0 0.0
    %237 = vmatpush1.msra.mxu0 0.0
    %238 = vmatprep.subr.mxu0 0.0
    %239 = vmatpush1.msra.mxu0 0.0
    %240 = vmatprep.subr.mxu0 0.0
    %241 = vmatpush1.msra.mxu0 0.0
    %242 = vmatprep.subr.mxu0 0.0
    %243 = vmatpush1.msra.mxu0 %v121
    %244 = vmatprep.subr.mxu0 0.0
    %245 = vmatpush2.msra.mxu0 0.0
    %246 = vmatprep.subr.mxu0 0.0
    %247 = vmatpush2.msra.mxu0 0.0
    %248 = vmatprep.subr.mxu0 0.0
    %249 = vmatpush2.msra.mxu0 0.0
    %250 = vmatprep.subr.mxu0 0.0
    %251 = vmatpush2.msra.mxu0 0.0
    %252 = vmatprep.subr.mxu0 0.0
    %253 = vmatpush2.msra.mxu0 0.0
    %254 = vmatprep.subr.mxu0 0.0
    %255 = vmatpush2.msra.mxu0 0.0
    %256 = vmatprep.subr.mxu0 0.0
    %257 = vmatpush2.msra.mxu0 0.0
    %258 = vmatprep.subr.mxu0 0.0
    %259 = vmatpush2.msra.mxu0 0.0
    %260 = vmatprep.subr.mxu0 0.0
    %261 = vmatpush2.msra.mxu0 0.0
    %262 = vmatprep.subr.mxu0 0.0
    %263 = vmatpush2.msra.mxu0 0.0
    %264 = vmatprep.subr.mxu0 0.0
    %265 = vmatpush2.msra.mxu0 0.0
    %266 = vmatprep.subr.mxu0 0.0
    %267 = vmatpush2.msra.mxu0 0.0
    %268 = vmatprep.subr.mxu0 0.0
    %269 = vmatpush2.msra.mxu0 0.0
    %270 = vmatprep.subr.mxu0 0.0
    %271 = vmatpush2.msra.mxu0 0.0
    %272 = vmatprep.subr.mxu0 0.0
    %273 = vmatpush2.msra.mxu0 0.0
    %274 = vmatprep.subr.mxu0 0.0
    %275 = vmatpush2.msra.mxu0 0.0
    %276 = vmatprep.mubr.f32.mxu0 0.0
    %277 = vmatmul.mubr.f32.gmra.mxu0 %v165
    %v278 = vpop.f32.mrf.mxu0
    %v279 = vadd.f32 %v129, %v278
    %v280 = vpop.f32.mrf.mxu0
    %281 = vmatprep.mubr.f32.mxu0 0.0
    %282 = vmatmul.mubr.f32.gmra.mxu0 %v168
    %v283 = vpop.f32.mrf.mxu0
    %v284 = vadd.f32 %v129, %v283
    %v285 = vpop.f32.mrf.mxu0
    %286 = vmatprep.mubr.f32.mxu0 0.0
    %287 = vmatmul.mubr.f32.gmra.mxu0 %v171
    %v288 = vpop.f32.mrf.mxu0
    %v289 = vadd.f32 %v129, %v288
    %v290 = vpop.f32.mrf.mxu0
    %291 = vmatprep.mubr.f32.mxu0 0.0
    %292 = vmatmul.mubr.f32.gmra.mxu0 %v174
    %v293 = vpop.f32.mrf.mxu0
    %v294 = vadd.f32 %v129, %v293
    %v295 = vpop.f32.mrf.mxu0
    %296 = vmatprep.mubr.f32.mxu0 0.0
    %297 = vmatmul.mubr.f32.gmra.mxu0 %v177
    %v298 = vpop.f32.mrf.mxu0
    %v299 = vadd.f32 %v129, %v298
    %v300 = vpop.f32.mrf.mxu0
    %301 = vmatprep.mubr.f32.mxu0 0.0
    %302 = vmatmul.mubr.f32.gmra.mxu0 %v180
    %v303 = vpop.f32.mrf.mxu0
    %v304 = vadd.f32 %v129, %v303
    %v305 = vpop.f32.mrf.mxu0
    %306 = vmatprep.mubr.f32.mxu0 0.0
    %307 = vmatmul.mubr.f32.gmra.mxu0 %v183
    %v308 = vpop.f32.mrf.mxu0
    %v309 = vadd.f32 %v129, %v308
    %v310 = vpop.f32.mrf.mxu0
    %311 = vmatprep.mubr.f32.mxu0 0.0
    %312 = vmatmul.mubr.f32.gmra.mxu0 %v186
    %v313 = vpop.f32.mrf.mxu0
    %v314 = vadd.f32 %v129, %v313
    %v315 = vpop.f32.mrf.mxu0
    %316 = vmatprep.mubr.f32.mxu0 0.0
    %317 = vmatmul.mubr.f32.gmra.mxu0 %v189
    %v318 = vpop.f32.mrf.mxu0
    %v319 = vadd.f32 %v129, %v318
    %v320 = vpop.f32.mrf.mxu0
    %321 = vmatprep.mubr.f32.mxu0 0.0
    %322 = vmatmul.mubr.f32.gmra.mxu0 %v192
    %v323 = vpop.f32.mrf.mxu0
    %v324 = vadd.f32 %v129, %v323
    %v325 = vpop.f32.mrf.mxu0
    %326 = vmatprep.mubr.f32.mxu0 0.0
    %327 = vmatmul.mubr.f32.gmra.mxu0 %v195
    %v328 = vpop.f32.mrf.mxu0
    %v329 = vadd.f32 %v129, %v328
    %v330 = vpop.f32.mrf.mxu0
    %331 = vmatprep.mubr.f32.mxu0 0.0
    %332 = vmatmul.mubr.f32.gmra.mxu0 %v198
    %v333 = vpop.f32.mrf.mxu0
    %v334 = vadd.f32 %v129, %v333
    %v335 = vpop.f32.mrf.mxu0
    %336 = vmatprep.mubr.f32.mxu0 0.0
    %337 = vmatmul.mubr.f32.gmra.mxu0 %v201
    %v338 = vpop.f32.mrf.mxu0
    %v339 = vadd.f32 %v129, %v338
    %v340 = vpop.f32.mrf.mxu0
    %341 = vmatprep.mubr.f32.mxu0 0.0
    %342 = vmatmul.mubr.f32.gmra.mxu0 %v204
    %v343 = vpop.f32.mrf.mxu0
    %v344 = vadd.f32 %v129, %v343
    %v345 = vpop.f32.mrf.mxu0
    %346 = vmatprep.mubr.f32.mxu0 0.0
    %347 = vmatmul.mubr.f32.gmra.mxu0 %v207
    %v348 = vpop.f32.mrf.mxu0
    %v349 = vadd.f32 %v129, %v348
    %v350 = vpop.f32.mrf.mxu0
    %351 = vmatprep.mubr.f32.mxu0 0.0
    %352 = vmatmul.mubr.f32.gmra.mxu0 %v210
    %v353 = vpop.f32.mrf.mxu0
    %v354 = vadd.f32 %v129, %v353
    %v355 = vpop.f32.mrf.mxu0
    %356 = vdwg.mxu0
    %v357 = vmax.f32 %v279, 0.0
    %v358 = vmax.f32 %v284, 0.0
    %v359 = vmax.f32 %v289, 0.0
    %v360 = vmax.f32 %v294, 0.0
    %v361 = vmax.f32 %v299, 0.0
    %v362 = vmax.f32 %v304, 0.0
    %v363 = vmax.f32 %v309, 0.0
    %v364 = vmax.f32 %v314, 0.0
    %v365 = vmax.f32 %v319, 0.0
    %v366 = vmax.f32 %v324, 0.0
    %v367 = vmax.f32 %v329, 0.0
    %v368 = vmax.f32 %v334, 0.0
    %v369 = vmax.f32 %v339, 0.0
    %v370 = vmax.f32 %v344, 0.0
    %v371 = vmax.f32 %v349, 0.0
    %v372 = vmax.f32 %v354, 0.0
    %v373 = vld [vmem:[%s4] sm:$0xff]
    %v374 = vld [vmem:[%s4 + $0x8] sm:$0xff]
    %v375 = vld [vmem:[%s4 + $0x10] sm:$0xff]
    %v376 = vld [vmem:[%s4 + $0x18] sm:$0xff]
    %v377 = vld [vmem:[%s4 + $0x20] sm:$0xff]
    %v378 = vld [vmem:[%s4 + $0x28] sm:$0xff]
    %v379 = vld [vmem:[%s4 + $0x30] sm:$0xff]
    %v380 = vld [vmem:[%s4 + $0x38] sm:$0xff]
    %v381 = vld [vmem:[%s4 + $0x40] sm:$0xff]
    %v382 = vld [vmem:[%s4 + $0x48] sm:$0xff]
    %v383 = vld [vmem:[%s4 + $0x50] sm:$0xff]
    %v384 = vld [vmem:[%s4 + $0x58] sm:$0xff]
    %v385 = vld [vmem:[%s4 + $0x60] sm:$0xff]
    %v386 = vld [vmem:[%s4 + $0x68] sm:$0xff]
    %v387 = vld [vmem:[%s4 + $0x70] sm:$0xff]
    %v388 = vld [vmem:[%s4 + $0x78] sm:$0xff]
    %389 = vmatprep.subr.mxu0 0.0
    %390 = vmatpush1.msra.mxu0 %v388
    %391 = vmatprep.subr.mxu0 0.0
    %392 = vmatpush1.msra.mxu0 %v387
    %393 = vmatprep.subr.mxu0 0.0
    %394 = vmatpush1.msra.mxu0 %v386
    %395 = vmatprep.subr.mxu0 0.0
    %396 = vmatpush1.msra.mxu0 %v385
    %397 = vmatprep.subr.mxu0 0.0
    %398 = vmatpush1.msra.mxu0 %v384
    %399 = vmatprep.subr.mxu0 0.0
    %400 = vmatpush1.msra.mxu0 %v383
    %401 = vmatprep.subr.mxu0 0.0
    %402 = vmatpush1.msra.mxu0 %v382
    %403 = vmatprep.subr.mxu0 0.0
    %404 = vmatpush1.msra.mxu0 %v381
    %405 = vmatprep.subr.mxu0 0.0
    %406 = vmatpush1.msra.mxu0 %v380
    %407 = vmatprep.subr.mxu0 0.0
    %408 = vmatpush1.msra.mxu0 %v379
    %409 = vmatprep.subr.mxu0 0.0
    %410 = vmatpush1.msra.mxu0 %v378
    %411 = vmatprep.subr.mxu0 0.0
    %412 = vmatpush1.msra.mxu0 %v377
    %413 = vmatprep.subr.mxu0 0.0
    %414 = vmatpush1.msra.mxu0 %v376
    %415 = vmatprep.subr.mxu0 0.0
    %416 = vmatpush1.msra.mxu0 %v375
    %417 = vmatprep.subr.mxu0 0.0
    %418 = vmatpush1.msra.mxu0 %v374
    %419 = vmatprep.subr.mxu0 0.0
    %420 = vmatpush1.msra.mxu0 %v373
    %421 = vmatprep.subr.mxu0 0.0
    %422 = vmatpush2.msra.mxu0 0.0
    %423 = vmatprep.subr.mxu0 0.0
    %424 = vmatpush2.msra.mxu0 0.0
    %425 = vmatprep.subr.mxu0 0.0
    %426 = vmatpush2.msra.mxu0 0.0
    %427 = vmatprep.subr.mxu0 0.0
    %428 = vmatpush2.msra.mxu0 0.0
    %429 = vmatprep.subr.mxu0 0.0
    %430 = vmatpush2.msra.mxu0 0.0
    %431 = vmatprep.subr.mxu0 0.0
    %432 = vmatpush2.msra.mxu0 0.0
    %433 = vmatprep.subr.mxu0 0.0
    %434 = vmatpush2.msra.mxu0 0.0
    %435 = vmatprep.subr.mxu0 0.0
    %436 = vmatpush2.msra.mxu0 0.0
    %437 = vmatprep.subr.mxu0 0.0
    %438 = vmatpush2.msra.mxu0 0.0
    %439 = vmatprep.subr.mxu0 0.0
    %440 = vmatpush2.msra.mxu0 0.0
    %441 = vmatprep.subr.mxu0 0.0
    %442 = vmatpush2.msra.mxu0 0.0
    %443 = vmatprep.subr.mxu0 0.0
    %444 = vmatpush2.msra.mxu0 0.0
    %445 = vmatprep.subr.mxu0 0.0
    %446 = vmatpush2.msra.mxu0 0.0
    %447 = vmatprep.subr.mxu0 0.0
    %448 = vmatpush2.msra.mxu0 0.0
    %449 = vmatprep.subr.mxu0 0.0
    %450 = vmatpush2.msra.mxu0 0.0
    %451 = vmatprep.subr.mxu0 0.0
    %452 = vmatpush2.msra.mxu0 0.0
    %453 = vmatprep.mubr.f32.mxu0 0.0
    %454 = vmatmul.mubr.f32.gmra.mxu0 %v357
    %v455 = vpop.f32.mrf.mxu0
    %v456 = vadd.f32 0.0, %v455
    %v457 = vpop.f32.mrf.mxu0
    %458 = vmatprep.mubr.f32.mxu0 0.0
    %459 = vmatmul.mubr.f32.gmra.mxu0 %v358
    %v460 = vpop.f32.mrf.mxu0
    %v461 = vadd.f32 0.0, %v460
    %v462 = vpop.f32.mrf.mxu0
    %463 = vmatprep.mubr.f32.mxu0 0.0
    %464 = vmatmul.mubr.f32.gmra.mxu0 %v359
    %v465 = vpop.f32.mrf.mxu0
    %v466 = vadd.f32 0.0, %v465
    %v467 = vpop.f32.mrf.mxu0
    %468 = vmatprep.mubr.f32.mxu0 0.0
    %469 = vmatmul.mubr.f32.gmra.mxu0 %v360
    %v470 = vpop.f32.mrf.mxu0
    %v471 = vadd.f32 0.0, %v470
    %v472 = vpop.f32.mrf.mxu0
    %473 = vmatprep.mubr.f32.mxu0 0.0
    %474 = vmatmul.mubr.f32.gmra.mxu0 %v361
    %v475 = vpop.f32.mrf.mxu0
    %v476 = vadd.f32 0.0, %v475
    %v477 = vpop.f32.mrf.mxu0
    %478 = vmatprep.mubr.f32.mxu0 0.0
    %479 = vmatmul.mubr.f32.gmra.mxu0 %v362
    %v480 = vpop.f32.mrf.mxu0
    %v481 = vadd.f32 0.0, %v480
    %v482 = vpop.f32.mrf.mxu0
    %483 = vmatprep.mubr.f32.mxu0 0.0
    %484 = vmatmul.mubr.f32.gmra.mxu0 %v363
    %v485 = vpop.f32.mrf.mxu0
    %v486 = vadd.f32 0.0, %v485
    %v487 = vpop.f32.mrf.mxu0
    %488 = vmatprep.mubr.f32.mxu0 0.0
    %489 = vmatmul.mubr.f32.gmra.mxu0 %v364
    %v490 = vpop.f32.mrf.mxu0
    %v491 = vadd.f32 0.0, %v490
    %v492 = vpop.f32.mrf.mxu0
    %493 = vmatprep.mubr.f32.mxu0 0.0
    %494 = vmatmul.mubr.f32.gmra.mxu0 %v365
    %v495 = vpop.f32.mrf.mxu0
    %v496 = vadd.f32 0.0, %v495
    %v497 = vpop.f32.mrf.mxu0
    %498 = vmatprep.mubr.f32.mxu0 0.0
    %499 = vmatmul.mubr.f32.gmra.mxu0 %v366
    %v500 = vpop.f32.mrf.mxu0
    %v501 = vadd.f32 0.0, %v500
    %v502 = vpop.f32.mrf.mxu0
    %503 = vmatprep.mubr.f32.mxu0 0.0
    %504 = vmatmul.mubr.f32.gmra.mxu0 %v367
    %v505 = vpop.f32.mrf.mxu0
    %v506 = vadd.f32 0.0, %v505
    %v507 = vpop.f32.mrf.mxu0
    %508 = vmatprep.mubr.f32.mxu0 0.0
    %509 = vmatmul.mubr.f32.gmra.mxu0 %v368
    %v510 = vpop.f32.mrf.mxu0
    %v511 = vadd.f32 0.0, %v510
    %v512 = vpop.f32.mrf.mxu0
    %513 = vmatprep.mubr.f32.mxu0 0.0
    %514 = vmatmul.mubr.f32.gmra.mxu0 %v369
    %v515 = vpop.f32.mrf.mxu0
    %v516 = vadd.f32 0.0, %v515
    %v517 = vpop.f32.mrf.mxu0
    %518 = vmatprep.mubr.f32.mxu0 0.0
    %519 = vmatmul.mubr.f32.gmra.mxu0 %v370
    %v520 = vpop.f32.mrf.mxu0
    %v521 = vadd.f32 0.0, %v520
    %v522 = vpop.f32.mrf.mxu0
    %523 = vmatprep.mubr.f32.mxu0 0.0
    %524 = vmatmul.mubr.f32.gmra.mxu0 %v371
    %v525 = vpop.f32.mrf.mxu0
    %v526 = vadd.f32 0.0, %v525
    %v527 = vpop.f32.mrf.mxu0
    %528 = vmatprep.mubr.f32.mxu0 0.0
    %529 = vmatmul.mubr.f32.gmra.mxu0 %v372
    %v530 = vpop.f32.mrf.mxu0
    %v531 = vadd.f32 0.0, %v530
    %v532 = vpop.f32.mrf.mxu0
    %533 = vdwg.mxu0
    %v534 = vld [vmem:[%s5] sm:$0x1]
    %v536 = vlaneseq
    %v537 = vshrl.u32 %v536, 7
    %v538 = vsub.s32 0, %v537
    %v539 = vrot.slane %v534, %v538
    %541 = vmatprep.subr.mxu0 0.0
    %542 = vmatpush1.msra.mxu0 %v531
    %543 = vmatprep.subr.mxu0 0.0
    %544 = vmatpush1.msra.mxu0 %v526
    %545 = vmatprep.subr.mxu0 0.0
    %546 = vmatpush1.msra.mxu0 %v521
    %547 = vmatprep.subr.mxu0 0.0
    %548 = vmatpush1.msra.mxu0 %v516
    %549 = vmatprep.subr.mxu0 0.0
    %550 = vmatpush1.msra.mxu0 %v511
    %551 = vmatprep.subr.mxu0 0.0
    %552 = vmatpush1.msra.mxu0 %v506
    %553 = vmatprep.subr.mxu0 0.0
    %554 = vmatpush1.msra.mxu0 %v501
    %555 = vmatprep.subr.mxu0 0.0
    %556 = vmatpush1.msra.mxu0 %v496
    %557 = vmatprep.subr.mxu0 0.0
    %558 = vmatpush1.msra.mxu0 %v491
    %559 = vmatprep.subr.mxu0 0.0
    %560 = vmatpush1.msra.mxu0 %v486
    %561 = vmatprep.subr.mxu0 0.0
    %562 = vmatpush1.msra.mxu0 %v481
    %563 = vmatprep.subr.mxu0 0.0
    %564 = vmatpush1.msra.mxu0 %v476
    %565 = vmatprep.subr.mxu0 0.0
    %566 = vmatpush1.msra.mxu0 %v471
    %567 = vmatprep.subr.mxu0 0.0
    %568 = vmatpush1.msra.mxu0 %v466
    %569 = vmatprep.subr.mxu0 0.0
    %570 = vmatpush1.msra.mxu0 %v461
    %571 = vmatprep.subr.mxu0 0.0
    %572 = vmatpush1.msra.mxu0 %v456
    %573 = vmatprep.subr.mxu0 0.0
    %574 = vmatpush2.msra.mxu0 0.0
    %575 = vmatprep.subr.mxu0 0.0
    %576 = vmatpush2.msra.mxu0 0.0
    %577 = vmatprep.subr.mxu0 0.0
    %578 = vmatpush2.msra.mxu0 0.0
    %579 = vmatprep.subr.mxu0 0.0
    %580 = vmatpush2.msra.mxu0 0.0
    %581 = vmatprep.subr.mxu0 0.0
    %582 = vmatpush2.msra.mxu0 0.0
    %583 = vmatprep.subr.mxu0 0.0
    %584 = vmatpush2.msra.mxu0 0.0
    %585 = vmatprep.subr.mxu0 0.0
    %586 = vmatpush2.msra.mxu0 0.0
    %587 = vmatprep.subr.mxu0 0.0
    %588 = vmatpush2.msra.mxu0 0.0
    %589 = vmatprep.subr.mxu0 0.0
    %590 = vmatpush2.msra.mxu0 0.0
    %591 = vmatprep.subr.mxu0 0.0
    %592 = vmatpush2.msra.mxu0 0.0
    %593 = vmatprep.subr.mxu0 0.0
    %594 = vmatpush2.msra.mxu0 0.0
    %595 = vmatprep.subr.mxu0 0.0
    %596 = vmatpush2.msra.mxu0 0.0
    %597 = vmatprep.subr.mxu0 0.0
    %598 = vmatpush2.msra.mxu0 0.0
    %599 = vmatprep.subr.mxu0 0.0
    %600 = vmatpush2.msra.mxu0 0.0
    %601 = vmatprep.subr.mxu0 0.0
    %602 = vmatpush2.msra.mxu0 0.0
    %603 = vmatprep.subr.mxu0 0.0
    %604 = vmatpush2.msra.mxu0 0.0
    %605 = vmatprep.mubr.f32.mxu0 0.0
    %606 = vmatmul.mubr.f32.gmra.mxu0 %v36
    %v607 = vpop.f32.mrf.mxu0
    %v608 = vadd.f32 %v539, %v607
    %v609 = vpop.f32.mrf.mxu0
    %610 = vdwg.mxu0
    %v611 = vmax.f32 %v608, 0.0
    %v612 = vld [vmem:[%s7] sm:$0xff]
    %v613 = vld [vmem:[%s7 + $0x8] sm:$0xff]
    %v614 = vld [vmem:[%s7 + $0x10] sm:$0xff]
    %v615 = vld [vmem:[%s7 + $0x18] sm:$0xff]
    %v616 = vld [vmem:[%s7 + $0x20] sm:$0xff]
    %v617 = vld [vmem:[%s7 + $0x28] sm:$0xff]
    %v618 = vld [vmem:[%s7 + $0x30] sm:$0xff]
    %v619 = vld [vmem:[%s7 + $0x38] sm:$0xff]
    %v620 = vld [vmem:[%s7 + $0x40] sm:$0xff]
    %v621 = vld [vmem:[%s7 + $0x48] sm:$0xff]
    %v622 = vld [vmem:[%s7 + $0x50] sm:$0xff]
    %v623 = vld [vmem:[%s7 + $0x58] sm:$0xff]
    %v624 = vld [vmem:[%s7 + $0x60] sm:$0xff]
    %v625 = vld [vmem:[%s7 + $0x68] sm:$0xff]
    %v626 = vld [vmem:[%s7 + $0x70] sm:$0xff]
    %v627 = vld [vmem:[%s7 + $0x78] sm:$0xff]
    %v628 = vld [vmem:[%s8] sm:$0xff]
    %v629 = vld [vmem:[%s8 + $0x8] sm:$0xff]
    %v630 = vld [vmem:[%s8 + $0x10] sm:$0xff]
    %v631 = vld [vmem:[%s8 + $0x18] sm:$0xff]
    %v632 = vld [vmem:[%s8 + $0x20] sm:$0xff]
    %v633 = vld [vmem:[%s8 + $0x28] sm:$0xff]
    %v634 = vld [vmem:[%s8 + $0x30] sm:$0xff]
    %v635 = vld [vmem:[%s8 + $0x38] sm:$0xff]
    %v636 = vld [vmem:[%s8 + $0x40] sm:$0xff]
    %v637 = vld [vmem:[%s8 + $0x48] sm:$0xff]
    %v638 = vld [vmem:[%s8 + $0x50] sm:$0xff]
    %v639 = vld [vmem:[%s8 + $0x58] sm:$0xff]
    %v640 = vld [vmem:[%s8 + $0x60] sm:$0xff]
    %v641 = vld [vmem:[%s8 + $0x68] sm:$0xff]
    %v642 = vld [vmem:[%s8 + $0x70] sm:$0xff]
    %v643 = vld [vmem:[%s8 + $0x78] sm:$0xff]
    %644 = vmatprep.subr.mxu0 0.0
    %645 = vmatpush1.msra.mxu0 %v643
    %646 = vmatprep.subr.mxu0 0.0
    %647 = vmatpush1.msra.mxu0 %v642
    %648 = vmatprep.subr.mxu0 0.0
    %649 = vmatpush1.msra.mxu0 %v641
    %650 = vmatprep.subr.mxu0 0.0
    %651 = vmatpush1.msra.mxu0 %v640
    %652 = vmatprep.subr.mxu0 0.0
    %653 = vmatpush1.msra.mxu0 %v639
    %654 = vmatprep.subr.mxu0 0.0
    %655 = vmatpush1.msra.mxu0 %v638
    %656 = vmatprep.subr.mxu0 0.0
    %657 = vmatpush1.msra.mxu0 %v637
    %658 = vmatprep.subr.mxu0 0.0
    %659 = vmatpush1.msra.mxu0 %v636
    %660 = vmatprep.subr.mxu0 0.0
    %661 = vmatpush1.msra.mxu0 %v635
    %662 = vmatprep.subr.mxu0 0.0
    %663 = vmatpush1.msra.mxu0 %v634
    %664 = vmatprep.subr.mxu0 0.0
    %665 = vmatpush1.msra.mxu0 %v633
    %666 = vmatprep.subr.mxu0 0.0
    %667 = vmatpush1.msra.mxu0 %v632
    %668 = vmatprep.subr.mxu0 0.0
    %669 = vmatpush1.msra.mxu0 %v631
    %670 = vmatprep.subr.mxu0 0.0
    %671 = vmatpush1.msra.mxu0 %v630
    %672 = vmatprep.subr.mxu0 0.0
    %673 = vmatpush1.msra.mxu0 %v629
    %674 = vmatprep.subr.mxu0 0.0
    %675 = vmatpush1.msra.mxu0 %v628
    %676 = vmatprep.subr.mxu0 0.0
    %677 = vmatpush2.msra.mxu0 0.0
    %678 = vmatprep.subr.mxu0 0.0
    %679 = vmatpush2.msra.mxu0 0.0
    %680 = vmatprep.subr.mxu0 0.0
    %681 = vmatpush2.msra.mxu0 0.0
    %682 = vmatprep.subr.mxu0 0.0
    %683 = vmatpush2.msra.mxu0 0.0
    %684 = vmatprep.subr.mxu0 0.0
    %685 = vmatpush2.msra.mxu0 0.0
    %686 = vmatprep.subr.mxu0 0.0
    %687 = vmatpush2.msra.mxu0 0.0
    %688 = vmatprep.subr.mxu0 0.0
    %689 = vmatpush2.msra.mxu0 0.0
    %690 = vmatprep.subr.mxu0 0.0
    %691 = vmatpush2.msra.mxu0 0.0
    %692 = vmatprep.subr.mxu0 0.0
    %693 = vmatpush2.msra.mxu0 0.0
    %694 = vmatprep.subr.mxu0 0.0
    %695 = vmatpush2.msra.mxu0 0.0
    %696 = vmatprep.subr.mxu0 0.0
    %697 = vmatpush2.msra.mxu0 0.0
    %698 = vmatprep.subr.mxu0 0.0
    %699 = vmatpush2.msra.mxu0 0.0
    %700 = vmatprep.subr.mxu0 0.0
    %701 = vmatpush2.msra.mxu0 0.0
    %702 = vmatprep.subr.mxu0 0.0
    %703 = vmatpush2.msra.mxu0 0.0
    %704 = vmatprep.subr.mxu0 0.0
    %705 = vmatpush2.msra.mxu0 0.0
    %706 = vmatprep.subr.mxu0 0.0
    %707 = vmatpush2.msra.mxu0 0.0
    %708 = vmatprep.mubr.f32.mxu0 0.0
    %709 = vmatmul.mubr.f32.gmra.mxu0 %v611
    %v710 = vpop.f32.mrf.mxu0
    %v711 = vadd.f32 0.0, %v710
    %v712 = vpop.f32.mrf.mxu0
    %713 = vdwg.mxu0
    %714 = vmatprep.subr.mxu0 0.0
    %715 = vmatpush1.msra.mxu0 %v627
    %716 = vmatprep.subr.mxu0 0.0
    %717 = vmatpush1.msra.mxu0 %v626
    %718 = vmatprep.subr.mxu0 0.0
    %719 = vmatpush1.msra.mxu0 %v625
    %720 = vmatprep.subr.mxu0 0.0
    %721 = vmatpush1.msra.mxu0 %v624
    %722 = vmatprep.subr.mxu0 0.0
    %723 = vmatpush1.msra.mxu0 %v623
    %724 = vmatprep.subr.mxu0 0.0
    %725 = vmatpush1.msra.mxu0 %v622
    %726 = vmatprep.subr.mxu0 0.0
    %727 = vmatpush1.msra.mxu0 %v621
    %728 = vmatprep.subr.mxu0 0.0
    %729 = vmatpush1.msra.mxu0 %v620
    %730 = vmatprep.subr.mxu0 0.0
    %731 = vmatpush1.msra.mxu0 %v619
    %732 = vmatprep.subr.mxu0 0.0
    %733 = vmatpush1.msra.mxu0 %v618
    %734 = vmatprep.subr.mxu0 0.0
    %735 = vmatpush1.msra.mxu0 %v617
    %736 = vmatprep.subr.mxu0 0.0
    %737 = vmatpush1.msra.mxu0 %v616
    %738 = vmatprep.subr.mxu0 0.0
    %739 = vmatpush1.msra.mxu0 %v615
    %740 = vmatprep.subr.mxu0 0.0
    %741 = vmatpush1.msra.mxu0 %v614
    %742 = vmatprep.subr.mxu0 0.0
    %743 = vmatpush1.msra.mxu0 %v613
    %744 = vmatprep.subr.mxu0 0.0
    %745 = vmatpush1.msra.mxu0 %v612
    %746 = vmatprep.subr.mxu0 0.0
    %747 = vmatpush2.msra.mxu0 0.0
    %748 = vmatprep.subr.mxu0 0.0
    %749 = vmatpush2.msra.mxu0 0.0
    %750 = vmatprep.subr.mxu0 0.0
    %751 = vmatpush2.msra.mxu0 0.0
    %752 = vmatprep.subr.mxu0 0.0
    %753 = vmatpush2.msra.mxu0 0.0
    %754 = vmatprep.subr.mxu0 0.0
    %755 = vmatpush2.msra.mxu0 0.0
    %756 = vmatprep.subr.mxu0 0.0
    %757 = vmatpush2.msra.mxu0 0.0
    %758 = vmatprep.subr.mxu0 0.0
    %759 = vmatpush2.msra.mxu0 0.0
    %760 = vmatprep.subr.mxu0 0.0
    %761 = vmatpush2.msra.mxu0 0.0
    %762 = vmatprep.subr.mxu0 0.0
    %763 = vmatpush2.msra.mxu0 0.0
    %764 = vmatprep.subr.mxu0 0.0
    %765 = vmatpush2.msra.mxu0 0.0
    %766 = vmatprep.subr.mxu0 0.0
    %767 = vmatpush2.msra.mxu0 0.0
    %768 = vmatprep.subr.mxu0 0.0
    %769 = vmatpush2.msra.mxu0 0.0
    %770 = vmatprep.subr.mxu0 0.0
    %771 = vmatpush2.msra.mxu0 0.0
    %772 = vmatprep.subr.mxu0 0.0
    %773 = vmatpush2.msra.mxu0 0.0
    %774 = vmatprep.subr.mxu0 0.0
    %775 = vmatpush2.msra.mxu0 0.0
    %776 = vmatprep.subr.mxu0 0.0
    %777 = vmatpush2.msra.mxu0 0.0
    %778 = vmatprep.mubr.f32.mxu0 0.0
    %779 = vmatmul.mubr.f32.gmra.mxu0 %v36
    %v780 = vpop.f32.mrf.mxu0
    %v781 = vadd.f32 %v711, %v780
    %v782 = vpop.f32.mrf.mxu0
    %783 = vdwg.mxu0
    %v784 = vld [vmem:[%s9] sm:$0x1]
    %v786 = vlaneseq
    %v787 = vshrl.u32 %v786, 7
    %v788 = vsub.s32 0, %v787
    %v789 = vrot.slane %v784, %v788
    %v791 = vadd.f32 %v781, %v789
    %v792 = vxor.u32 %v791, 2147483648
    %v793 = vmul.f32 %v792, 1.442695
    %v794 = vpow.pop %v793
    %v795 = vadd.f32 %v794, 1.0
    %v796 = vrcp.pop %v795
    %v797 = vmul.f32 1.0, %v796
    %798 = vst [vmem:[#allocation2] sm:$0xff] %v797
    // Predicated region
    $region42: #{discriminator_forward.1} parent=1 // pred_check
      _
    $region43: #{discriminator_forward.1} parent=1 // pred_check_branch
      %800 = sbr.rel (0) target = $region45
    $region44: #{discriminator_forward.1} parent=1 // pred_region
      %s802 = ssub.s32 128, 128
      %803 = vsyncadd [#allocation3], %s802
      %s805 = sshll.u32 [#allocation2], 4
      %s806 = int_to_ptr.vmem [resolvable:$true] %s805
      %808 = dma.vmem_to_hbm [thread:$0]  %s806, 128, %s10, [#allocation3]
    $region45: #{discriminator_forward.1} parent=1 // pred_fallthru
      _
    // Predicated region
    $region46: #{discriminator_forward.1} parent=1 // pred_check
      _
    $region47: #{discriminator_forward.1} parent=1 // pred_check_branch
      %810 = sbr.rel (0) target = $region49
    $region48: #{discriminator_forward.1} parent=1 // pred_region
      %811 = dma.done [#allocation3], 128
    $region49: #{discriminator_forward.1} parent=1 // pred_fallthru
      _
    %812 = vsyncpa [#allocation3], 1

</llo_original>
